<compile_context>
chip_gen: v5e
topology: v5e:2x2
jax: 0.10.0
libtpu: 0.0.40
codegen_flags: <defaults>
</compile_context>

<pallas_src>
import functools

import numpy as np
import jax
import jax.numpy as jnp
from jax.experimental import pallas as pl
from jax.experimental.pallas import tpu as pltpu


# ------------------------------ in-kernel helpers (traced) ------------------------------


def _leaky_relu(y, slope):
    return jnp.where(y >= 0, y, slope * y)


def _zero_ring(pad_ref):
    """Zero only the 1-element boundary ring of a padded-input scratch (review #3)."""
    nb, hp, wp, c = pad_ref.shape
    z_row = jnp.zeros((nb, 1, wp, c), jnp.float32)
    z_col = jnp.zeros((nb, hp - 2, 1, c), jnp.float32)
    pad_ref[:, 0:1, :, :] = z_row
    pad_ref[:, hp - 1:hp, :, :] = z_row
    pad_ref[:, 1:hp - 1, 0:1, :] = z_col
    pad_ref[:, 1:hp - 1, wp - 1:wp, :] = z_col


def _phase_deconv(pad_ref, h, cin, w_val, s_val, b_val, act, slope):
    """Phase-decomposed ConvTranspose2d(k=4, s=2, p=1) (+folded affine +activation).

    pad_ref holds the 1-ring-padded, un-dilated input (nb, h+2, h+2, cin).
    The im2col patch is built as a VALUE (no scratch round trip, review #2):
    9 shifted windows concatenated along lanes -> one MXU matmul.
    Returns the phase-packed activated output (nb, h, h, 4*cout) with
        out[n, m, v, (2*py+px)*cout + co] == ConvT(x)[n, co, 2m+py, 2v+px]
    """
    nb = pad_ref.shape[0]
    rows = nb * h * h
    wins = []
    for oy in range(3):
        for ox in range(3):
            wins.append(pad_ref[:, oy:oy + h, ox:ox + h, :])
    patch = jnp.concatenate(wins, axis=-1).reshape(rows, 9 * cin)
    y = jnp.dot(patch, w_val, preferred_element_type=jnp.float32)      # (rows, 4*cout)
    y = y * s_val + b_val
    if act == "leaky_relu":
        y = _leaky_relu(y, slope)
    else:  # sigmoid
        y = jax.nn.sigmoid(y)
    return y.reshape(nb, h, h, w_val.shape[1])


def _interleave_phases(y, cout):
    """Phase-packed (nb, h, h, 4*cout), channel order (py, px, co)
    -> spatially interleaved (nb, 2h, 2h, cout)."""
    nb, h, w, _ = y.shape
    r0 = y[..., :2 * cout].reshape(nb, h, 2 * w, cout)      # even output rows (py = 0)
    r1 = y[..., 2 * cout:].reshape(nb, h, 2 * w, cout)      # odd output rows  (py = 1)
    r0 = r0.reshape(nb, h, 1, 2 * w * cout)
    r1 = r1.reshape(nb, h, 1, 2 * w * cout)
    q = jnp.concatenate([r0, r1], axis=2)                   # (nb, h, 2, 2w*cout)
    return q.reshape(nb, 2 * h, 2 * w, cout)


# ------------------------------------ Pallas kernels ------------------------------------


def _lstm_kernel(x_ref, wih_ref, whh_ref, b_ref, feat_ref, *, B, T, H):
    """Single-layer LSTM (PyTorch gate order i,f,g,o), h0=c0=0.
    Input projection for all timesteps is hoisted into one matmul."""
    k_in = x_ref.shape[-1]
    xw = jnp.dot(x_ref[...].reshape(T * B, k_in), wih_ref[...],
                 preferred_element_type=jnp.float32) + b_ref[...]       # (T*B, 4H)
    whh = whh_ref[...]
    h = jnp.zeros((B, H), jnp.float32)
    c = jnp.zeros((B, H), jnp.float32)
    hs = []
    for t in range(T):                       # static unroll; recurrence is serial anyway
        g = xw[t * B:(t + 1) * B, :] + jnp.dot(h, whh, preferred_element_type=jnp.float32)
        i_g = jax.nn.sigmoid(g[:, 0 * H:1 * H])
        f_g = jax.nn.sigmoid(g[:, 1 * H:2 * H])
        g_g = jnp.tanh(g[:, 2 * H:3 * H])
        o_g = jax.nn.sigmoid(g[:, 3 * H:4 * H])
        c = f_g * c + i_g * g_g
        h = o_g * jnp.tanh(c)
        hs.append(h)
    # (B, T, H) -> (B*T, H): batch-major rows, matching the final (B, T, ...) reshape.
    feat_ref[...] = jnp.stack(hs, axis=1).reshape(B * T, H)


def _conv_stack_kernel(
    feat_ref,
    w1, s1, b1, w2, s2, b2, w3, s3, b3, w4, s4, b4, w5, s5, b5,
    out_ref,
    pad2, pad3, pad4, pad5,
    *, C, slope,
):
    """upc1..upc5 for one block of samples; all intermediates VMEM/vreg resident."""
    C1, C2, C3, C4, C5 = C
    nb = feat_ref.shape[0]
    feat = feat_ref[...].reshape(nb, feat_ref.shape[-1])

    # ---- upc1: ConvTranspose2d(4, 1, 0) on a 1x1 input == one matmul ----
    y = jnp.dot(feat, w1[...], preferred_element_type=jnp.float32)      # (nb, 16*C1)
    y = _leaky_relu(y * s1[...] + b1[...], slope)
    d = y.reshape(nb, 4, 4, C1)                                         # NHWC, 4x4

    # ---- upc2..upc4: phase-decomposed stride-2 deconvs ----
    inner = [(pad2, w2, s2, b2, 4, C1, C2),
             (pad3, w3, s3, b3, 8, C2, C3),
             (pad4, w4, s4, b4, 16, C3, C4)]
    for pad_ref, wr, sr, br, h, cin, cout in inner:
        _zero_ring(pad_ref)
        pad_ref[:, 1:h + 1, 1:h + 1, :] = d                             # interior only
        yp = _phase_deconv(pad_ref, h, cin, wr[...], sr[...], br[...],
                           "leaky_relu", slope)
        d = _interleave_phases(yp, cout)                                # (nb, 2h, 2h, cout)

    # ---- upc5 (+ sigmoid): output stays phase-packed, W folded into lanes (review #1) ----
    _zero_ring(pad5)
    pad5[:, 1:33, 1:33, :] = d                                          # (nb, 32, 32, C4)
    y5 = _phase_deconv(pad5, 32, C4, w5[...], s5[...], b5[...], "sigmoid", slope)
    out_ref[...] = y5.reshape(nb, 32, 32 * 4 * C5)                      # lane-dense store


# --------------------------------------- wrapper ----------------------------------------


def _pick_sample_block(n):
    """Samples per grid step: keep >=2 grid steps (feed both v7x TensorCores) and cap the
    block at 2 so per-step VMEM stays ~10-13 MB regardless of batch size."""
    for d in (2, 1):
        if n % d == 0 and n // d >= 2:
            return d
    return n  # n == 1


def decoder_forward(x, prepped, *, frames, channels, image_h, image_w, k_dim, lstm_mode):
    use_lstm = lstm_mode in ("decoder", "both")
    assert image_h == 64 and image_w == 64, "architecture upsamples 1->4->8->16->32->64"
    C1, C2, C3, C4, C5 = prepped["cdims"]

    if use_lstm:
        x_btk = x.reshape(-1, frames, k_dim).astype(jnp.float32)
        B, T = x_btk.shape[0], frames
        H = prepped["hidden"]
        x_tbk = jnp.transpose(x_btk, (1, 0, 2))                  # (T, B, K) time-major
        feat = pl.pallas_call(
            functools.partial(_lstm_kernel, B=B, T=T, H=H),
            out_shape=jax.ShapeDtypeStruct((B * T, H), jnp.float32),
        )(x_tbk, prepped["wih_t"], prepped["whh_t"], prepped["lstm_bias"])
        cin0 = H
    else:
        feat = x.reshape(-1, k_dim).astype(jnp.float32)
        cin0 = k_dim

    N = feat.shape[0]
    NB = _pick_sample_block(N)
    grid = (N // NB,)
    feat3 = feat.reshape(N, 1, cin0)        # keep the blocked dim out of the (8,128) dims

    conv_args, conv_specs = [], []
    for i in range(5):
        for arr in (prepped["w"][i], prepped["scale"][i], prepped["shift"][i]):
            conv_args.append(arr)
            conv_specs.append(pl.BlockSpec(arr.shape, lambda g: (0, 0)))

    in_specs = [pl.BlockSpec((NB, 1, cin0), lambda g: (g, 0, 0))] + conv_specs
    out_spec = pl.BlockSpec((NB, 32, 32 * 4 * C5), lambda g: (g, 0, 0))

    scratch = [
        pltpu.VMEM((NB, 6, 6, C1), jnp.float32),     # padded input of upc2
        pltpu.VMEM((NB, 10, 10, C2), jnp.float32),   # padded input of upc3
        pltpu.VMEM((NB, 18, 18, C3), jnp.float32),   # padded input of upc4
        pltpu.VMEM((NB, 34, 34, C4), jnp.float32),   # padded input of upc5
    ]

    kernel = functools.partial(_conv_stack_kernel, C=(C1, C2, C3, C4, C5), slope=0.2)
    y5 = pl.pallas_call(
        kernel,
        out_shape=jax.ShapeDtypeStruct((N, 32, 32 * 4 * C5), jnp.float32),
        grid_spec=pltpu.PrefetchScalarGridSpec(
            num_scalar_prefetch=0, grid=grid,
            in_specs=in_specs, out_specs=out_spec, scratch_shapes=scratch),
        compiler_params=pltpu.CompilerParams(
            dimension_semantics=("parallel",),
            vmem_limit_bytes=48 * 1024 * 1024),
    )(feat3, *conv_args)

    # Phase-packed (N, 32, 32*4*C) -> NCHW image: pure layout plumbing done by XLA.
    y5 = y5.reshape(N, 32, 32, 2, 2, channels)                 # (n, m, v, py, px, co)
    out = jnp.transpose(y5, (0, 5, 1, 3, 2, 4)).reshape(N, channels, image_h, image_w)
    return out.reshape(-1, frames, channels, image_h, image_w)


# -------------------------------- parameter init & prep ---------------------------------


def init_decoder_params(key, *, k_dim, hidden, conv_dim, channels, use_lstm):
    params = {}
    keys = iter(jax.random.split(key, 64))
    if use_lstm:
        params["lstm"] = {
            "w_ih": 0.1 * jax.random.normal(next(keys), (4 * hidden, k_dim), jnp.float32),
            "w_hh": 0.1 * jax.random.normal(next(keys), (4 * hidden, hidden), jnp.float32),
            "b_ih": 0.1 * jax.random.normal(next(keys), (4 * hidden,), jnp.float32),
            "b_hh": 0.1 * jax.random.normal(next(keys), (4 * hidden,), jnp.float32),
        }
    first_conv = hidden if use_lstm else k_dim
    layer_cfg = [
        (first_conv, conv_dim * 8, 1, 0, True, "leaky_relu"),    # upc1
        (conv_dim * 8, conv_dim * 4, 2, 1, True, "leaky_relu"),  # upc2
        (conv_dim * 4, conv_dim * 2, 2, 1, True, "leaky_relu"),  # upc3
        (conv_dim * 2, conv_dim, 2, 1, True, "leaky_relu"),      # upc4
        (conv_dim, channels, 2, 1, False, "sigmoid"),            # upc5
    ]
    eps = 1e-5
    convs = []
    for cin, cout, stride, pad, has_bn, act in layer_cfg:
        w = 0.05 * jax.random.normal(next(keys), (cin, cout, 4, 4), jnp.float32)
        b = 0.05 * jax.random.normal(next(keys), (cout,), jnp.float32)
        if has_bn:
            gamma = 1.0 + 0.1 * jax.random.normal(next(keys), (cout,), jnp.float32)
            beta = 0.1 * jax.random.normal(next(keys), (cout,), jnp.float32)
            rmean = 0.1 * jax.random.normal(next(keys), (cout,), jnp.float32)
            rvar = 1.0 + 0.1 * jax.random.uniform(next(keys), (cout,), jnp.float32)
            a = gamma / jnp.sqrt(rvar + eps)
            scale = a
            shift = a * (b - rmean) + beta      # folds conv bias + eval-mode BN
        else:
            scale = jnp.ones((cout,), jnp.float32)
            shift = b
        convs.append({"w": w, "scale": scale, "shift": shift,
                      "stride": stride, "pad": pad, "act": act})
    params["convs"] = convs
    return params


# Output parity -> {padded-input offset: transposed-conv kernel tap}, for k=4, s=2, p=1.
_TAPS = {0: {0: 3, 1: 1}, 1: {1: 2, 2: 0}}


def _phase_pack_weight(w_pt):
    """PyTorch ConvTranspose2d weight (Cin, Cout, 4, 4) -> (9*Cin, 4*Cout) phase weight.
    Rows ordered (oy, ox, ci), cols ordered (py, px, co)."""
    w_np = np.asarray(w_pt, np.float32)
    cin, cout = w_np.shape[0], w_np.shape[1]
    w_comb = np.zeros((9 * cin, 4 * cout), np.float32)
    for py in range(2):
        for px in range(2):
            for oy, ky in _TAPS[py].items():
                for ox, kx in _TAPS[px].items():
                    r0 = (oy * 3 + ox) * cin
                    c0 = (py * 2 + px) * cout
                    w_comb[r0:r0 + cin, c0:c0 + cout] = w_np[:, :, ky, kx]
    return jnp.asarray(w_comb)


def prepare_decoder_params(params, *, use_lstm):
    """Precompute all weight transforms once (kept out of the forward hot path)."""
    prepped = {"w": [], "scale": [], "shift": [], "cdims": []}
    if use_lstm:
        w_ih = params["lstm"]["w_ih"]
        w_hh = params["lstm"]["w_hh"]
        prepped["wih_t"] = jnp.asarray(w_ih.T, jnp.float32)
        prepped["whh_t"] = jnp.asarray(w_hh.T, jnp.float32)
        prepped["lstm_bias"] = jnp.asarray(
            (params["lstm"]["b_ih"] + params["lstm"]["b_hh"]).reshape(1, -1), jnp.float32)
        prepped["hidden"] = int(w_hh.shape[1])
    for li, layer in enumerate(params["convs"]):
        w_pt = np.asarray(layer["w"], np.float32)
        cout = int(w_pt.shape[1])
        prepped["cdims"].append(cout)
        if li == 0:
            # upc1: (Cin, Cout, 4, 4) -> (Cin, 16*Cout); columns ordered (ky, kx, co).
            w = jnp.asarray(np.transpose(w_pt, (0, 2, 3, 1)).reshape(w_pt.shape[0], -1))
            reps = 16
        else:
            w = _phase_pack_weight(w_pt)
            reps = 4
        scale = np.tile(np.asarray(layer["scale"], np.float32), reps).reshape(1, -1)
        shift = np.tile(np.asarray(layer["shift"], np.float32), reps).reshape(1, -1)
        prepped["w"].append(w)
        prepped["scale"].append(jnp.asarray(scale))
        prepped["shift"].append(jnp.asarray(shift))
    prepped["cdims"] = tuple(prepped["cdims"])
    return prepped


# ------------------------------- pure-JAX reference (check) ------------------------------


def _ref_conv_transpose(x_nchw, w_pt, scale, shift, stride, pad, act, slope):
    k = w_pt.shape[2]
    q = k - 1 - pad
    w_conv = jnp.transpose(w_pt[:, :, ::-1, ::-1], (1, 0, 2, 3))   # (Cout, Cin, K, K)
    y = jax.lax.conv_general_dilated(
        x_nchw.astype(jnp.float32), w_conv.astype(jnp.float32),
        window_strides=(1, 1), padding=[(q, q), (q, q)],
        lhs_dilation=(stride, stride),
        dimension_numbers=("NCHW", "OIHW", "NCHW"),
        precision=jax.lax.Precision.HIGHEST)
    y = y * scale[None, :, None, None] + shift[None, :, None, None]
    if act == "leaky_relu":
        return jnp.where(y >= 0, y, slope * y)
    return jax.nn.sigmoid(y)


def reference_decoder(x, params, *, frames, channels, image_h, image_w, k_dim, lstm_mode):
    use_lstm = lstm_mode in ("decoder", "both")
    if use_lstm:
        w_ih = params["lstm"]["w_ih"]
        w_hh = params["lstm"]["w_hh"]
        b = params["lstm"]["b_ih"] + params["lstm"]["b_hh"]
        xb = x.reshape(-1, frames, k_dim).astype(jnp.float32)
        B, H = xb.shape[0], w_hh.shape[1]
        h = jnp.zeros((B, H), jnp.float32)
        c = jnp.zeros((B, H), jnp.float32)
        hs = []
        for t in range(frames):
            g = (jnp.dot(xb[:, t, :], w_ih.T, precision=jax.lax.Precision.HIGHEST)
                 + jnp.dot(h, w_hh.T, precision=jax.lax.Precision.HIGHEST) + b)
            i_g = jax.nn.sigmoid(g[:, :H])
            f_g = jax.nn.sigmoid(g[:, H:2 * H])
            g_g = jnp.tanh(g[:, 2 * H:3 * H])
            o_g = jax.nn.sigmoid(g[:, 3 * H:])
            c = f_g * c + i_g * g_g
            h = o_g * jnp.tanh(c)
            hs.append(h)
        feat = jnp.stack(hs, axis=1).reshape(B * frames, H)
    else:
        feat = x.reshape(-1, k_dim)
    d = feat.reshape(feat.shape[0], feat.shape[1], 1, 1)
    for layer in params["convs"]:
        d = _ref_conv_transpose(d, layer["w"], layer["scale"], layer["shift"],
                                layer["stride"], layer["pad"], layer["act"], 0.2)
    return d.reshape(-1, frames, channels, image_h, image_w)


# ----------------------------------------- main ------------------------------------------


if __name__ == "__main__":
    # args: frames=2, channels=3, image 64x64 (fixed by 1->4->8->16->32->64 upsampling),
    #       conv_dim=4, decoder_lstm_output_size=k_dim=16, lstm='decoder'
    batch, frames, channels = 2, 2, 3
    conv_dim = 4
    k_dim = 16
    image_h = image_w = 64
    lstm_mode = "decoder"

    key = jax.random.PRNGKey(0)
    x_key, p_key = jax.random.split(key)
    x = jax.random.normal(x_key, (batch, frames, k_dim), jnp.float32)

    use_lstm = lstm_mode in ("decoder", "both")
    raw_params = init_decoder_params(
        p_key, k_dim=k_dim, hidden=k_dim, conv_dim=conv_dim, channels=channels,
        use_lstm=use_lstm)
    prepped = prepare_decoder_params(raw_params, use_lstm=use_lstm)

    out = decoder_forward(
        x, prepped, frames=frames, channels=channels, image_h=image_h, image_w=image_w,
        k_dim=k_dim, lstm_mode=lstm_mode)
    out = jax.block_until_ready(out)

    assert out.shape == (batch, frames, channels, image_h, image_w), out.shape
    assert bool(jnp.all(jnp.isfinite(out)))
    assert bool(jnp.all((out >= 0.0) & (out <= 1.0)))  # final sigmoid

    ref = jax.block_until_ready(reference_decoder(
        x, raw_params, frames=frames, channels=channels, image_h=image_h, image_w=image_w,
        k_dim=k_dim, lstm_mode=lstm_mode))
    max_err = float(jnp.max(jnp.abs(out - ref)))
    assert max_err < 1e-2, f"mismatch vs pure-JAX reference: max|diff|={max_err}"

    print("KERNEL_OK")
</pallas_src>

<mosaic_0001>
module attributes {stable_mosaic.version = 11 : i64} {
  func.func @_lstm_kernel(%arg0: memref<2x2x16xf32, #tpu.memory_space<vmem>>, %arg1: memref<16x64xf32, #tpu.memory_space<vmem>>, %arg2: memref<16x64xf32, #tpu.memory_space<vmem>>, %arg3: memref<1x64xf32, #tpu.memory_space<vmem>>, %arg4: memref<4x16xf32, #tpu.memory_space<vmem>>) attributes {dimension_semantics = [], scalar_prefetch = 0 : i64, scratch_operands = 0 : i64, tpu.core_type = #tpu.core_type<tc>} {
    %c0 = arith.constant 0 : index
    %c0_0 = arith.constant 0 : index
    %c0_1 = arith.constant 0 : index
    %0 = vector.load %arg0[%c0, %c0_0, %c0_1] : memref<2x2x16xf32, #tpu.memory_space<vmem>>, vector<2x2x16xf32>
    %1 = vector.shape_cast %0 : vector<2x2x16xf32> to vector<4x16xf32>
    %c0_2 = arith.constant 0 : index
    %c0_3 = arith.constant 0 : index
    %2 = vector.load %arg1[%c0_2, %c0_3] : memref<16x64xf32, #tpu.memory_space<vmem>>, vector<16x64xf32>
    %cst = arith.constant dense<0.000000e+00> : vector<4x64xf32>
    %3 = tpu.matmul %1, %2, %cst {dimension_numbers = #tpu.dot_dimension_numbers<[1], [0], [0], [1], [0, 0, 1, 1], [], []>} : vector<4x16xf32>, vector<16x64xf32>, vector<4x64xf32> -> vector<4x64xf32>
    %c0_4 = arith.constant 0 : index
    %c0_5 = arith.constant 0 : index
    %4 = vector.load %arg3[%c0_4, %c0_5] : memref<1x64xf32, #tpu.memory_space<vmem>>, vector<1x64xf32>
    %5 = vector.broadcast %4 : vector<1x64xf32> to vector<4x64xf32>
    %6 = arith.addf %3, %5 : vector<4x64xf32>
    %c0_6 = arith.constant 0 : index
    %c0_7 = arith.constant 0 : index
    %7 = vector.load %arg2[%c0_6, %c0_7] : memref<16x64xf32, #tpu.memory_space<vmem>>, vector<16x64xf32>
    %cst_8 = arith.constant 0.000000e+00 : f32
    %8 = vector.broadcast %cst_8 : f32 to vector<2x16xf32>
    %cst_9 = arith.constant 0.000000e+00 : f32
    %9 = vector.broadcast %cst_9 : f32 to vector<2x16xf32>
    %10 = vector.extract_strided_slice %6 {offsets = [0, 0], sizes = [2, 64], strides = [1, 1]} : vector<4x64xf32> to vector<2x64xf32>
    %cst_10 = arith.constant dense<0.000000e+00> : vector<2x64xf32>
    %11 = tpu.matmul %8, %7, %cst_10 {dimension_numbers = #tpu.dot_dimension_numbers<[1], [0], [0], [1], [0, 0, 1, 1], [], []>} : vector<2x16xf32>, vector<16x64xf32>, vector<2x64xf32> -> vector<2x64xf32>
    %12 = arith.addf %10, %11 : vector<2x64xf32>
    %13 = vector.extract_strided_slice %12 {offsets = [0, 0], sizes = [2, 16], strides = [1, 1]} : vector<2x64xf32> to vector<2x16xf32>
    %14 = arith.negf %13 : vector<2x16xf32>
    %15 = math.exp %14 : vector<2x16xf32>
    %cst_11 = arith.constant 1.000000e+00 : f32
    %16 = vector.broadcast %cst_11 : f32 to vector<2x16xf32>
    %17 = arith.addf %16, %15 : vector<2x16xf32>
    %18 = arith.divf %16, %17 : vector<2x16xf32>
    %19 = vector.extract_strided_slice %12 {offsets = [0, 16], sizes = [2, 16], strides = [1, 1]} : vector<2x64xf32> to vector<2x16xf32>
    %20 = arith.negf %19 : vector<2x16xf32>
    %21 = math.exp %20 : vector<2x16xf32>
    %cst_12 = arith.constant 1.000000e+00 : f32
    %22 = vector.broadcast %cst_12 : f32 to vector<2x16xf32>
    %23 = arith.addf %22, %21 : vector<2x16xf32>
    %24 = arith.divf %22, %23 : vector<2x16xf32>
    %25 = vector.extract_strided_slice %12 {offsets = [0, 32], sizes = [2, 16], strides = [1, 1]} : vector<2x64xf32> to vector<2x16xf32>
    %26 = math.tanh %25 : vector<2x16xf32>
    %27 = vector.extract_strided_slice %12 {offsets = [0, 48], sizes = [2, 16], strides = [1, 1]} : vector<2x64xf32> to vector<2x16xf32>
    %28 = arith.negf %27 : vector<2x16xf32>
    %29 = math.exp %28 : vector<2x16xf32>
    %cst_13 = arith.constant 1.000000e+00 : f32
    %30 = vector.broadcast %cst_13 : f32 to vector<2x16xf32>
    %31 = arith.addf %30, %29 : vector<2x16xf32>
    %32 = arith.divf %30, %31 : vector<2x16xf32>
    %33 = arith.mulf %24, %9 : vector<2x16xf32>
    %34 = arith.mulf %18, %26 : vector<2x16xf32>
    %35 = arith.addf %33, %34 : vector<2x16xf32>
    %36 = math.tanh %35 : vector<2x16xf32>
    %37 = arith.mulf %32, %36 : vector<2x16xf32>
    %38 = vector.extract_strided_slice %6 {offsets = [2, 0], sizes = [2, 64], strides = [1, 1]} : vector<4x64xf32> to vector<2x64xf32>
    %cst_14 = arith.constant dense<0.000000e+00> : vector<2x64xf32>
    %39 = tpu.matmul %37, %7, %cst_14 {dimension_numbers = #tpu.dot_dimension_numbers<[1], [0], [0], [1], [0, 0, 1, 1], [], []>} : vector<2x16xf32>, vector<16x64xf32>, vector<2x64xf32> -> vector<2x64xf32>
    %40 = arith.addf %38, %39 : vector<2x64xf32>
    %41 = vector.extract_strided_slice %40 {offsets = [0, 0], sizes = [2, 16], strides = [1, 1]} : vector<2x64xf32> to vector<2x16xf32>
    %42 = arith.negf %41 : vector<2x16xf32>
    %43 = math.exp %42 : vector<2x16xf32>
    %cst_15 = arith.constant 1.000000e+00 : f32
    %44 = vector.broadcast %cst_15 : f32 to vector<2x16xf32>
    %45 = arith.addf %44, %43 : vector<2x16xf32>
    %46 = arith.divf %44, %45 : vector<2x16xf32>
    %47 = vector.extract_strided_slice %40 {offsets = [0, 16], sizes = [2, 16], strides = [1, 1]} : vector<2x64xf32> to vector<2x16xf32>
    %48 = arith.negf %47 : vector<2x16xf32>
    %49 = math.exp %48 : vector<2x16xf32>
    %cst_16 = arith.constant 1.000000e+00 : f32
    %50 = vector.broadcast %cst_16 : f32 to vector<2x16xf32>
    %51 = arith.addf %50, %49 : vector<2x16xf32>
    %52 = arith.divf %50, %51 : vector<2x16xf32>
    %53 = vector.extract_strided_slice %40 {offsets = [0, 32], sizes = [2, 16], strides = [1, 1]} : vector<2x64xf32> to vector<2x16xf32>
    %54 = math.tanh %53 : vector<2x16xf32>
    %55 = vector.extract_strided_slice %40 {offsets = [0, 48], sizes = [2, 16], strides = [1, 1]} : vector<2x64xf32> to vector<2x16xf32>
    %56 = arith.negf %55 : vector<2x16xf32>
    %57 = math.exp %56 : vector<2x16xf32>
    %cst_17 = arith.constant 1.000000e+00 : f32
    %58 = vector.broadcast %cst_17 : f32 to vector<2x16xf32>
    %59 = arith.addf %58, %57 : vector<2x16xf32>
    %60 = arith.divf %58, %59 : vector<2x16xf32>
    %61 = arith.mulf %52, %35 : vector<2x16xf32>
    %62 = arith.mulf %46, %54 : vector<2x16xf32>
    %63 = arith.addf %61, %62 : vector<2x16xf32>
    %64 = math.tanh %63 : vector<2x16xf32>
    %65 = arith.mulf %60, %64 : vector<2x16xf32>
    %66 = vector.shape_cast %37 : vector<2x16xf32> to vector<2x1x16xf32>
    %67 = vector.shape_cast %65 : vector<2x16xf32> to vector<2x1x16xf32>
    %68 = tpu.concatenate %66, %67 in 1 : vector<2x1x16xf32>, vector<2x1x16xf32> -> vector<2x2x16xf32>
    %69 = vector.shape_cast %68 : vector<2x2x16xf32> to vector<4x16xf32>
    %c0_18 = arith.constant 0 : index
    %c0_19 = arith.constant 0 : index
    %70 = vector.load %arg4[%c0_18, %c0_19] : memref<4x16xf32, #tpu.memory_space<vmem>>, vector<4x16xf32>
    tpu.vector_store %arg4[%c0_18, %c0_19], %69 {strides = array<i32>} : memref<4x16xf32, #tpu.memory_space<vmem>>, vector<4x16xf32>,
    return
  }
}

</mosaic_0001>

<llo_original>
// kernel: tpu_custom_call.1
$region0: #{tpu_custom_call.1}
  #allocation0 [shape = 'u32[]', space=smem, size = 0x4, offset = 0x4, fixed_abs, tag = 'smem constant byte address 0x4 - core index']
  #allocation1 [shape = 'u32[72,128]{1,0:T(1,128)}', space=vmem, size = 0x9000, scoped, tag = 'internal scratch']
  %s0 = inlined_call_operand.hbm [shape: f32[2,2,16], index: 0, kind: input, shape index: {}]
  %s1 = inlined_call_operand.hbm [shape: f32[16,64], index: 1, kind: input, shape index: {}]
  %s2 = inlined_call_operand.hbm [shape: f32[16,64], index: 2, kind: input, shape index: {}]
  %s3 = inlined_call_operand.vmem [shape: f32[1,64], index: 3, kind: input, shape index: {}]
  %s4 = inlined_call_operand.hbm [shape: f32[4,16], index: 4, kind: output, shape index: {}]
  %s5 = sld [smem:[#allocation0]]
  $region38: #{tpu_custom_call.1} parent=0
    _
  %s7 = ssub.s32 1, %s5
  %s8 = scalar_select 0, %s7, %s5
  $region1: #{tpu_custom_call.1} parent=0
    #allocation2 [shape = 'u8[2048]{0}', space=vmem, size = 0x800, scoped, tag = 'input window, operand 0, single buffered']
    #allocation3 [shape = 's32[1]{0}', space=sflag, size = 0x4, scoped, tag = 'scoped memory for tpu_custom_call.1']
    #allocation4 [shape = 's32[1]{0}', space=sflag, size = 0x4, scoped, tag = 'scoped memory for tpu_custom_call.1']
    #allocation5 [shape = 'u8[8192]{0}', space=vmem, size = 0x2000, scoped, tag = 'input window, operand 1, single buffered']
    #allocation6 [shape = 's32[1]{0}', space=sflag, size = 0x4, scoped, tag = 'scoped memory for tpu_custom_call.1']
    #allocation7 [shape = 'u8[8192]{0}', space=vmem, size = 0x2000, scoped, tag = 'input window, operand 2, single buffered']
    #allocation8 [shape = 'u8[2048]{0}', space=vmem, size = 0x800, scoped, tag = 'output window, operand 0, single buffered']
    %9 = vsyncpa [#allocation3], 0
    %10 = vsyncpa [#allocation6], 0
    %11 = vsyncpa [#allocation4], 0
    // Predicated region
    $region2: #{tpu_custom_call.1} parent=1 // pred_check
      _
    $region3: #{tpu_custom_call.1} parent=1 // pred_check_branch
      %13 = sbr.rel (0) target = $region5
    $region4: #{tpu_custom_call.1} parent=1 // pred_region
      %15 = vsyncadd [#allocation3], 0
      %s16 = sshll.u32 %s0, 4
      %s17 = int_to_ptr.hbm [resolvable:$true] %s16
      %s18 = sshll.u32 [#allocation2], 4
      %s19 = int_to_ptr.vmem [resolvable:$true] %s18
      %24 = dma.hbm_to_vmem [thread:$0]  %s17, 64, %s19, [#allocation3], 32, 32, 2
    $region5: #{tpu_custom_call.1} parent=1 // pred_fallthru
      _
    // Predicated region
    $region6: #{tpu_custom_call.1} parent=1 // pred_check
      _
    $region7: #{tpu_custom_call.1} parent=1 // pred_check_branch
      %26 = sbr.rel (0) target = $region9
    $region8: #{tpu_custom_call.1} parent=1 // pred_region
      %28 = vsyncadd [#allocation6], 0
      %s29 = sshll.u32 %s1, 4
      %s30 = int_to_ptr.hbm [resolvable:$true] %s29
      %s31 = sshll.u32 [#allocation5], 4
      %s32 = int_to_ptr.vmem [resolvable:$true] %s31
      %37 = dma.hbm_to_vmem [thread:$0]  %s30, 256, %s32, [#allocation6], 128, 128, 8
    $region9: #{tpu_custom_call.1} parent=1 // pred_fallthru
      _
    // Predicated region
    $region10: #{tpu_custom_call.1} parent=1 // pred_check
      _
    $region11: #{tpu_custom_call.1} parent=1 // pred_check_branch
      %39 = sbr.rel (0) target = $region13
    $region12: #{tpu_custom_call.1} parent=1 // pred_region
      %41 = vsyncadd [#allocation6], 0
      %s42 = sshll.u32 %s2, 4
      %s43 = int_to_ptr.hbm [resolvable:$true] %s42
      %s44 = sshll.u32 [#allocation7], 4
      %s45 = int_to_ptr.vmem [resolvable:$true] %s44
      %50 = dma.hbm_to_vmem [thread:$0]  %s43, 256, %s45, [#allocation6], 128, 128, 8
    $region13: #{tpu_custom_call.1} parent=1 // pred_fallthru
      _
    // Predicated region
    $region14: #{tpu_custom_call.1} parent=1 // pred_check
      _
    $region15: #{tpu_custom_call.1} parent=1 // pred_check_branch
      %52 = sbr.rel (0) target = $region17
    $region16: #{tpu_custom_call.1} parent=1 // pred_region
      _
    $region17: #{tpu_custom_call.1} parent=1 // pred_fallthru
      _
    // Predicated region
    $region18: #{tpu_custom_call.1} parent=1 // pred_check
      _
    $region19: #{tpu_custom_call.1} parent=1 // pred_check_branch
      %54 = sbr.rel (0) target = $region21
    $region20: #{tpu_custom_call.1} parent=1 // pred_region
      %56 = dma.done [#allocation3], 64
    $region21: #{tpu_custom_call.1} parent=1 // pred_fallthru
      _
    // Predicated region
    $region22: #{tpu_custom_call.1} parent=1 // pred_check
      _
    $region23: #{tpu_custom_call.1} parent=1 // pred_check_branch
      %58 = sbr.rel (0) target = $region25
    $region24: #{tpu_custom_call.1} parent=1 // pred_region
      %60 = dma.done [#allocation6], 256
    $region25: #{tpu_custom_call.1} parent=1 // pred_fallthru
      _
    // Predicated region
    $region26: #{tpu_custom_call.1} parent=1 // pred_check
      _
    $region27: #{tpu_custom_call.1} parent=1 // pred_check_branch
      %62 = sbr.rel (0) target = $region29
    $region28: #{tpu_custom_call.1} parent=1 // pred_region
      %64 = dma.done [#allocation6], 256
    $region29: #{tpu_custom_call.1} parent=1 // pred_fallthru
      _
    %v65 = vld [vmem:[#allocation2] sm:$0x3]
    %v66 = vld [vmem:[#allocation2 + $0x2] sm:$0x3]
    %v67 = vld [vmem:[#allocation5] sm:$0xff]
    %v68 = vld [vmem:[#allocation5 + $0x8] sm:$0xff]
    %v69 = vld [vmem:[%s3] sm:$0x1]
    %v71 = vperm.slane %v69, 0
    %75 = vst [vmem:[#allocation1] ss:$4 sm:$0xff] %v65
    %s76 = scalar_lea.vmem [#allocation1], 1
    %77 = vst [vmem:[%s76] ss:$4 sm:$0xff] %v66
    %v78 = vld.sshfl [vmem:[#allocation1] sm:$0xff pattern:$0x73625140]
    %vm79 = vcmask 130048
    %v80 = vsel %vm79, %v78, 0
    %82 = vmatpush.msra.mxu0 0.0
    %83 = vmatpush.msra.mxu0 0.0
    %84 = vmatpush.msra.mxu0 0.0
    %85 = vmatpush.msra.mxu0 0.0
    %86 = vmatpush.msra.mxu0 0.0
    %87 = vmatpush.msra.mxu0 0.0
    %88 = vmatpush.msra.mxu0 0.0
    %89 = vmatpush.msra.mxu0 0.0
    %90 = vmatpush.msra.mxu0 0.0
    %91 = vmatpush.msra.mxu0 0.0
    %92 = vmatpush.msra.mxu0 0.0
    %93 = vmatpush.msra.mxu0 0.0
    %94 = vmatpush.msra.mxu0 0.0
    %95 = vmatpush.msra.mxu0 0.0
    %96 = vmatpush.msra.mxu0 %v68
    %97 = vmatpush.msra.mxu0 %v67
    %98 = vmatmul.f32.gmra.mxu0 %v80
    %v99 = vpop.f32.mrf.mxu0
    %v100 = vadd.f32 %v71, %v99
    %101 = vdwg.mxu0
    %v102 = vld [vmem:[#allocation7] sm:$0xff]
    %v103 = vld [vmem:[#allocation7 + $0x8] sm:$0xff]
    %v105 = vsel %vm79, 0.0, 0
    %107 = vmatpush.msra.mxu0 0.0
    %108 = vmatpush.msra.mxu0 0.0
    %109 = vmatpush.msra.mxu0 0.0
    %110 = vmatpush.msra.mxu0 0.0
    %111 = vmatpush.msra.mxu0 0.0
    %112 = vmatpush.msra.mxu0 0.0
    %113 = vmatpush.msra.mxu0 0.0
    %114 = vmatpush.msra.mxu0 0.0
    %115 = vmatpush.msra.mxu0 0.0
    %116 = vmatpush.msra.mxu0 0.0
    %117 = vmatpush.msra.mxu0 0.0
    %118 = vmatpush.msra.mxu0 0.0
    %119 = vmatpush.msra.mxu0 0.0
    %120 = vmatpush.msra.mxu0 0.0
    %121 = vmatpush.msra.mxu0 %v103
    %122 = vmatpush.msra.mxu0 %v102
    %123 = vmatmul.f32.gmra.mxu0 %v105
    %v124 = vpop.f32.mrf.mxu0
    %v125 = vadd.f32 0.0, %v124
    %126 = vdwg.mxu0
    %v127 = vadd.f32 %v100, %v125
    %v128 = vxor.u32 %v127, 2147483648
    %v129 = vmul.f32 %v128, 1.442695
    %v130 = vpow.pop %v129
    %v131 = vadd.f32 %v130, 1.0
    %v132 = vrcp.pop %v131
    %v133 = vmul.f32 %v131, %v132
    %v134 = vsub.f32 1.0, %v133
    %v135 = vmul.f32 %v132, %v134
    %v136 = vadd.f32 %v132, %v135
    %vm137 = vweird.f32 %v131
    %vm138 = vweird.f32 %v132
    %vm139 = vmor %vm137, %vm138
    %v140 = vsel %vm139, %v132, %v136
    %v141 = vand.u32 2147483647, %v131
    %vm142 = vcmp.eq.f32.partialorder %v141, 8.507059e+37
    %v143 = vand.u32 %v131, 2147483648
    %v144 = vor.u32 1.1754944e-38, %v143
    %v145 = vsel %vm142, %v144, %v140
    %v146 = vmul.f32 1.0, %v145
    %v147 = vtanh.pop %v127
    %v148 = vmul.f32 %v146, 0.0
    %150 = vrot.lane.b32.xlu0 %v147, 96
    %v151 = vpop.permute.xlu0 %150
    %v153 = vmul.f32 %v146, %v151
    %155 = vrot.lane.b32.xlu0 %v153, 16
    %v156 = vpop.permute.xlu0 %155
    %v158 = vadd.f32 %v148, %v156
    %v159 = vtanh.pop %v158
    %161 = vrot.lane.b32.xlu0 %v159, 32
    %v162 = vpop.permute.xlu0 %161
    %v164 = vmul.f32 %v146, %v162
    %166 = vrot.lane.b32.xlu0 %v164, 80
    %v167 = vpop.permute.xlu0 %166
    %v168 = vsel %vm79, %v167, 0
    %170 = vmatpush.msra.mxu0 0.0
    %171 = vmatpush.msra.mxu0 0.0
    %172 = vmatpush.msra.mxu0 0.0
    %173 = vmatpush.msra.mxu0 0.0
    %174 = vmatpush.msra.mxu0 0.0
    %175 = vmatpush.msra.mxu0 0.0
    %176 = vmatpush.msra.mxu0 0.0
    %177 = vmatpush.msra.mxu0 0.0
    %178 = vmatpush.msra.mxu0 0.0
    %179 = vmatpush.msra.mxu0 0.0
    %180 = vmatpush.msra.mxu0 0.0
    %181 = vmatpush.msra.mxu0 0.0
    %182 = vmatpush.msra.mxu0 0.0
    %183 = vmatpush.msra.mxu0 0.0
    %184 = vmatpush.msra.mxu0 %v103
    %185 = vmatpush.msra.mxu0 %v102
    %186 = vmatmul.f32.gmra.mxu0 %v168
    %v187 = vpop.f32.mrf.mxu0
    %v188 = vadd.f32 0.0, %v187
    %189 = vdwg.mxu0
    %v191 = vrot.slane %v188, 6
    %v193 = vadd.f32 %v100, %v191
    %v194 = vxor.u32 %v193, 2147483648
    %v195 = vmul.f32 %v194, 1.442695
    %v196 = vpow.pop %v195
    %v197 = vadd.f32 %v196, 1.0
    %v198 = vrcp.pop %v197
    %v199 = vmul.f32 %v197, %v198
    %v200 = vsub.f32 1.0, %v199
    %v201 = vmul.f32 %v198, %v200
    %v202 = vadd.f32 %v198, %v201
    %vm203 = vweird.f32 %v197
    %vm204 = vweird.f32 %v198
    %vm205 = vmor %vm203, %vm204
    %v206 = vsel %vm205, %v198, %v202
    %v207 = vand.u32 2147483647, %v197
    %vm208 = vcmp.eq.f32.partialorder %v207, 8.507059e+37
    %v209 = vand.u32 %v197, 2147483648
    %v210 = vor.u32 1.1754944e-38, %v209
    %v211 = vsel %vm208, %v210, %v206
    %v212 = vmul.f32 1.0, %v211
    %v213 = vtanh.pop %v193
    %v215 = vrot.slane %v158, 6
    %v217 = vmul.f32 %v212, %v215
    %219 = vrot.lane.b32.xlu0 %v213, 96
    %v220 = vpop.permute.xlu0 %219
    %v222 = vmul.f32 %v212, %v220
    %224 = vrot.lane.b32.xlu0 %v222, 16
    %v225 = vpop.permute.xlu0 %224
    %v227 = vadd.f32 %v217, %v225
    %v228 = vtanh.pop %v227
    %230 = vrot.lane.b32.xlu0 %v228, 32
    %v231 = vpop.permute.xlu0 %230
    %v233 = vmul.f32 %v212, %v231
    %v234 = vrot.slane %v164, 1
    %237 = vst [vmem:[#allocation1] sm:$0xff] %v233
    %s238 = scalar_lea.vmem [#allocation1], 2
    %v239 = vld [vmem:[%s238] ss:$9 sm:$0xff]
    %s240 = scalar_lea.vmem [#allocation1], 3
    %v241 = vld [vmem:[%s240] ss:$9 sm:$0xff]
    %v242 = vperm.slane %v239, 0
    %v243 = vperm.slane %v241, 0
    %vm246 = vcmask 1040384
    %v247 = vsel %vm246, %v164, %v242
    %v248 = vsel %vm246, %v234, %v243
    %251 = vst [vmem:[#allocation1] ss:$4 sm:$0xff] %v247
    %s252 = scalar_lea.vmem [#allocation1], 1
    %253 = vst [vmem:[%s252] ss:$4 sm:$0xff] %v248
    %v254 = vld.sshfl [vmem:[#allocation1] sm:$0xff pattern:$0x73625140]
    %255 = vrot.lane.b32.xlu0 %v254, 80
    %v256 = vpop.permute.xlu0 %255
    %vm258 = vcmask 125952
    %259 = vst.msk [vmem:[#allocation8] sm:$0xf] %vm258, %v256
    // Predicated region
    $region30: #{tpu_custom_call.1} parent=1 // pred_check
      _
    $region31: #{tpu_custom_call.1} parent=1 // pred_check_branch
      %261 = sbr.rel (0) target = $region33
    $region32: #{tpu_custom_call.1} parent=1 // pred_region
      %263 = vsyncadd [#allocation4], 0
      %s265 = sshll.u32 [#allocation8], 4
      %s266 = int_to_ptr.vmem [resolvable:$true] %s265
      %s267 = sshll.u32 %s4, 4
      %s268 = int_to_ptr.hbm [resolvable:$true] %s267
      %270 = dma.vmem_to_hbm [thread:$0]  %s266, 64, %s268, [#allocation4]
    $region33: #{tpu_custom_call.1} parent=1 // pred_fallthru
      _
    // Predicated region
    $region34: #{tpu_custom_call.1} parent=1 // pred_check
      _
    $region35: #{tpu_custom_call.1} parent=1 // pred_check_branch
      %272 = sbr.rel (0) target = $region37
    $region36: #{tpu_custom_call.1} parent=1 // pred_region
      %274 = dma.done [#allocation4], 64
    $region37: #{tpu_custom_call.1} parent=1 // pred_fallthru
      _
    %275 = vsyncpa [#allocation3], 1
    %276 = vsyncpa [#allocation6], 1
    %277 = vsyncpa [#allocation4], 1

</llo_original>
